<compile_context>
chip_gen: v6e
topology: v6e:2x2x1
jax: 0.10.0
libtpu: 0.0.40
codegen_flags: <defaults>
</compile_context>

<pallas_src>
import functools

import jax
import jax.numpy as jnp
from jax import lax
from jax.experimental import pallas as pl
from jax.experimental.pallas import tpu as pltpu

_LANES = 128
_SUBLANES = 8


def _recall_kernel(o_ref, t_ref, tp_ref, pos_ref, *,
                   block_rows, blocks_per_split, valid_rows, needs_mask):
    i = pl.program_id(1)  # inner ("arbitrary") reduction step

    @pl.when(i == 0)
    def _init():
        tp_ref[...] = jnp.zeros_like(tp_ref)
        pos_ref[...] = jnp.zeros_like(pos_ref)

    o = o_ref[...]
    t = t_ref[...]

    pos = t == 1.0                 # positives (tp + fn contribution)
    tp = pos & (o >= 0.5)          # true positives

    if needs_mask:
        # Handles (a) the partial last block and (b) the duplicated (clamped)
        # block read by the trailing step of the second split. Static flag, so
        # the common fully-aligned case pays nothing.
        s = pl.program_id(0)
        row_start = (s * blocks_per_split + i) * block_rows
        row_ids = row_start + lax.broadcasted_iota(jnp.int32, o.shape, 0)
        valid = row_ids < valid_rows
        pos = pos & valid
        tp = tp & valid

    lanes = o.shape[-1]
    # Fold (block_rows, 128) -> (8, 128) partials with pure elementwise adds
    # (cross-vreg vadds only; no XLU work inside the streaming loop).
    tp_ref[...] += tp.astype(jnp.float32).reshape(-1, _SUBLANES, lanes).sum(axis=0)
    pos_ref[...] += pos.astype(jnp.float32).reshape(-1, _SUBLANES, lanes).sum(axis=0)


def recall(outputs, targets, *, block_rows=2048, num_splits=2):
    """Pallas-based Recall. `outputs`/`targets` are arrays of identical shape."""
    assert outputs.shape == targets.shape

    o = jnp.ravel(outputs)
    t = jnp.ravel(targets)
    # Keep native f32/bf16 to avoid materializing full-size f32 copies in HBM.
    if o.dtype not in (jnp.float32, jnp.bfloat16):
        o = o.astype(jnp.float32)
    if t.dtype not in (jnp.float32, jnp.bfloat16):
        t = t.astype(jnp.float32)

    n = o.shape[0]
    rem = n % _LANES
    if rem:
        # Lane alignment only (at most 127 zeros). Zero padding is neutral:
        # 0 >= 0.5 is False and 0 == 1.0 is False.
        o = jnp.pad(o, (0, _LANES - rem))
        t = jnp.pad(t, (0, _LANES - rem))

    rows = o.shape[0] // _LANES
    o2 = o.reshape(rows, _LANES)
    t2 = t.reshape(rows, _LANES)

    # Tile sizing: biggest tile that comfortably fits scoped VMEM everywhere.
    blk = min(block_rows, ((rows + _SUBLANES - 1) // _SUBLANES) * _SUBLANES)
    num_blocks = int(pl.cdiv(rows, blk))
    splits = min(num_splits, num_blocks)          # leading "parallel" axis (2 TCs on v7x)
    bps = int(pl.cdiv(num_blocks, splits))        # reduction steps per split
    needs_mask = (rows % blk != 0) or (num_blocks % splits != 0)

    def in_map(s, i):
        # Clamp so the trailing (duplicated) step of an uneven split still reads
        # a valid block; its contribution is zeroed by the in-kernel row mask.
        return (jnp.minimum(s * bps + i, num_blocks - 1), 0)

    kernel = functools.partial(
        _recall_kernel,
        block_rows=blk,
        blocks_per_split=bps,
        valid_rows=rows,
        needs_mask=needs_mask,
    )

    bytes_accessed = rows * _LANES * (o2.dtype.itemsize + t2.dtype.itemsize)
    cost = pl.CostEstimate(flops=6 * rows * _LANES, transcendentals=0,
                           bytes_accessed=int(bytes_accessed))

    tp_acc, pos_acc = pl.pallas_call(
        kernel,
        out_shape=(
            jax.ShapeDtypeStruct((splits, _SUBLANES, _LANES), jnp.float32),
            jax.ShapeDtypeStruct((splits, _SUBLANES, _LANES), jnp.float32),
        ),
        grid_spec=pltpu.PrefetchScalarGridSpec(
            num_scalar_prefetch=0,
            grid=(splits, bps),
            in_specs=[
                pl.BlockSpec((blk, _LANES), in_map),
                pl.BlockSpec((blk, _LANES), in_map),
            ],
            out_specs=(
                pl.BlockSpec((None, _SUBLANES, _LANES), lambda s, i: (s, 0, 0)),
                pl.BlockSpec((None, _SUBLANES, _LANES), lambda s, i: (s, 0, 0)),
            ),
        ),
        compiler_params=pltpu.CompilerParams(
            dimension_semantics=("parallel", "arbitrary"),
            vmem_limit_bytes=32 * 1024 * 1024,
        ),
        cost_estimate=cost,
    )(o2, t2)

    tp = jnp.sum(tp_acc)
    tp_plus_fn = jnp.sum(pos_acc)
    return tp / tp_plus_fn  # NaN if there are no positive targets (matches torch 0/0)


def _reference_recall(outputs, targets):
    preds = jnp.where(outputs >= 0.5, 1.0, 0.0).ravel()
    tgts = targets.ravel()
    pos = tgts == 1.0
    tp = jnp.sum(jnp.where(pos & (preds == 1.0), 1.0, 0.0))
    fn = jnp.sum(jnp.where(pos & (preds != 1.0), 1.0, 0.0))
    return tp / (tp + fn)


if __name__ == "__main__":
    key = jax.random.PRNGKey(0)
    k1, k2, k3, k4 = jax.random.split(key, 4)

    # Primary example: NCHW batch=2, channels=4, spatial=16x16, values in [0, 1].
    shape = (2, 4, 16, 16)
    outputs = jax.random.uniform(k1, shape, dtype=jnp.float32)
    targets = (jax.random.uniform(k2, shape, dtype=jnp.float32) >= 0.5).astype(jnp.float32)

    result = recall(outputs, targets)
    jax.block_until_ready(result)
    ref = _reference_recall(outputs, targets)
    assert jnp.allclose(result, ref, atol=1e-6, equal_nan=True), (result, ref)

    # Same data, tiny block override: exercises the multi-block reduction and the
    # 2-way "parallel" split path.
    result2 = recall(outputs, targets, block_rows=8)
    jax.block_until_ready(result2)
    assert jnp.allclose(result2, ref, atol=1e-6, equal_nan=True), (result2, ref)

    # Ragged size (not a multiple of 8*128): exercises lane padding and the
    # in-kernel row mask for partial / duplicated blocks.
    rshape = (3, 5, 7, 11)
    outputs_r = jax.random.uniform(k3, rshape, dtype=jnp.float32)
    targets_r = (jax.random.uniform(k4, rshape, dtype=jnp.float32) >= 0.5).astype(jnp.float32)
    ref_r = _reference_recall(outputs_r, targets_r)

    result3 = recall(outputs_r, targets_r)               # single partial block, masked
    jax.block_until_ready(result3)
    assert jnp.allclose(result3, ref_r, atol=1e-6, equal_nan=True), (result3, ref_r)

    result4 = recall(outputs_r, targets_r, block_rows=8)  # split + masked tail block
    jax.block_until_ready(result4)
    assert jnp.allclose(result4, ref_r, atol=1e-6, equal_nan=True), (result4, ref_r)

    print("KERNEL_OK")
</pallas_src>

<mosaic_0001>
module attributes {stable_mosaic.version = 11 : i64} {
  func.func @_recall_kernel(%arg0: i32, %arg1: i32, %arg2: memref<16x128xf32, #tpu.memory_space<vmem>>, %arg3: memref<16x128xf32, #tpu.memory_space<vmem>>, %arg4: memref<1x8x128xf32, #tpu.memory_space<vmem>>, %arg5: memref<1x8x128xf32, #tpu.memory_space<vmem>>) attributes {dimension_semantics = [#tpu.dimension_semantics<parallel>, #tpu.dimension_semantics<arbitrary>], iteration_bounds = array<i64: 1, 1>, scalar_prefetch = 0 : i64, scratch_operands = 0 : i64, tpu.core_type = #tpu.core_type<tc>, window_params = [{transform_indices = @transform_0, window_bounds = array<i64: 16, 128>}, {transform_indices = @transform_1, window_bounds = array<i64: 16, 128>}, {transform_indices = @transform_2, window_bounds = array<i64: 1, 8, 128>}, {transform_indices = @transform_3, window_bounds = array<i64: 1, 8, 128>}]} {
    %c0_i32 = arith.constant 0 : i32
    %0 = arith.cmpi eq, %arg1, %c0_i32 : i32
    %1 = arith.extui %0 : i1 to i32
    %c0_i32_0 = arith.constant 0 : i32
    %2 = arith.cmpi ne, %1, %c0_i32_0 : i32
    scf.if %2 {
      %cst_19 = arith.constant 0.000000e+00 : f32
      %30 = vector.broadcast %cst_19 : f32 to vector<8x128xf32>
      %c0_20 = arith.constant 0 : index
      %c0_21 = arith.constant 0 : index
      %c0_22 = arith.constant 0 : index
      %31 = vector.load %arg4[%c0_20, %c0_21, %c0_22] : memref<1x8x128xf32, #tpu.memory_space<vmem>>, vector<1x8x128xf32>
      %32 = vector.shape_cast %31 : vector<1x8x128xf32> to vector<8x128xf32>
      %33 = vector.shape_cast %30 : vector<8x128xf32> to vector<1x8x128xf32>
      tpu.vector_store %arg4[%c0_20, %c0_21, %c0_22], %33 {strides = array<i32>} : memref<1x8x128xf32, #tpu.memory_space<vmem>>, vector<1x8x128xf32>,
      %cst_23 = arith.constant 0.000000e+00 : f32
      %34 = vector.broadcast %cst_23 : f32 to vector<8x128xf32>
      %c0_24 = arith.constant 0 : index
      %c0_25 = arith.constant 0 : index
      %c0_26 = arith.constant 0 : index
      %35 = vector.load %arg5[%c0_24, %c0_25, %c0_26] : memref<1x8x128xf32, #tpu.memory_space<vmem>>, vector<1x8x128xf32>
      %36 = vector.shape_cast %35 : vector<1x8x128xf32> to vector<8x128xf32>
      %37 = vector.shape_cast %34 : vector<8x128xf32> to vector<1x8x128xf32>
      tpu.vector_store %arg5[%c0_24, %c0_25, %c0_26], %37 {strides = array<i32>} : memref<1x8x128xf32, #tpu.memory_space<vmem>>, vector<1x8x128xf32>,
    } else {
    }
    %c0 = arith.constant 0 : index
    %c0_1 = arith.constant 0 : index
    %3 = vector.load %arg2[%c0, %c0_1] : memref<16x128xf32, #tpu.memory_space<vmem>>, vector<16x128xf32>
    %c0_2 = arith.constant 0 : index
    %c0_3 = arith.constant 0 : index
    %4 = vector.load %arg3[%c0_2, %c0_3] : memref<16x128xf32, #tpu.memory_space<vmem>>, vector<16x128xf32>
    %cst = arith.constant 1.000000e+00 : f32
    %5 = vector.broadcast %cst : f32 to vector<16x128xf32>
    %6 = arith.cmpf oeq, %4, %5 : vector<16x128xf32>
    %cst_4 = arith.constant 5.000000e-01 : f32
    %7 = vector.broadcast %cst_4 : f32 to vector<16x128xf32>
    %8 = arith.cmpf oge, %3, %7 : vector<16x128xf32>
    %9 = arith.andi %6, %8 : vector<16x128xi1>
    %c0_5 = arith.constant 0 : index
    %c0_6 = arith.constant 0 : index
    %c0_7 = arith.constant 0 : index
    %10 = vector.load %arg4[%c0_5, %c0_6, %c0_7] : memref<1x8x128xf32, #tpu.memory_space<vmem>>, vector<1x8x128xf32>
    %11 = vector.shape_cast %10 : vector<1x8x128xf32> to vector<8x128xf32>
    %12 = arith.extui %9 : vector<16x128xi1> to vector<16x128xi32>
    %13 = arith.sitofp %12 : vector<16x128xi32> to vector<16x128xf32>
    %14 = vector.shape_cast %13 : vector<16x128xf32> to vector<2x8x128xf32>
    %cst_8 = arith.constant dense<0.000000e+00> : vector<8x128xf32>
    %15 = vector.multi_reduction <add>, %14, %cst_8 [0] : vector<2x8x128xf32> to vector<8x128xf32>
    %16 = arith.addf %11, %15 : vector<8x128xf32>
    %c0_9 = arith.constant 0 : index
    %c0_10 = arith.constant 0 : index
    %c0_11 = arith.constant 0 : index
    %17 = vector.load %arg4[%c0_9, %c0_10, %c0_11] : memref<1x8x128xf32, #tpu.memory_space<vmem>>, vector<1x8x128xf32>
    %18 = vector.shape_cast %17 : vector<1x8x128xf32> to vector<8x128xf32>
    %19 = vector.shape_cast %16 : vector<8x128xf32> to vector<1x8x128xf32>
    tpu.vector_store %arg4[%c0_9, %c0_10, %c0_11], %19 {strides = array<i32>} : memref<1x8x128xf32, #tpu.memory_space<vmem>>, vector<1x8x128xf32>,
    %c0_12 = arith.constant 0 : index
    %c0_13 = arith.constant 0 : index
    %c0_14 = arith.constant 0 : index
    %20 = vector.load %arg5[%c0_12, %c0_13, %c0_14] : memref<1x8x128xf32, #tpu.memory_space<vmem>>, vector<1x8x128xf32>
    %21 = vector.shape_cast %20 : vector<1x8x128xf32> to vector<8x128xf32>
    %22 = arith.extui %6 : vector<16x128xi1> to vector<16x128xi32>
    %23 = arith.sitofp %22 : vector<16x128xi32> to vector<16x128xf32>
    %24 = vector.shape_cast %23 : vector<16x128xf32> to vector<2x8x128xf32>
    %cst_15 = arith.constant dense<0.000000e+00> : vector<8x128xf32>
    %25 = vector.multi_reduction <add>, %24, %cst_15 [0] : vector<2x8x128xf32> to vector<8x128xf32>
    %26 = arith.addf %21, %25 : vector<8x128xf32>
    %c0_16 = arith.constant 0 : index
    %c0_17 = arith.constant 0 : index
    %c0_18 = arith.constant 0 : index
    %27 = vector.load %arg5[%c0_16, %c0_17, %c0_18] : memref<1x8x128xf32, #tpu.memory_space<vmem>>, vector<1x8x128xf32>
    %28 = vector.shape_cast %27 : vector<1x8x128xf32> to vector<8x128xf32>
    %29 = vector.shape_cast %26 : vector<8x128xf32> to vector<1x8x128xf32>
    tpu.vector_store %arg5[%c0_16, %c0_17, %c0_18], %29 {strides = array<i32>} : memref<1x8x128xf32, #tpu.memory_space<vmem>>, vector<1x8x128xf32>,
    return
  }
  func.func @transform_0(%arg0: i32, %arg1: i32) -> (i32, i32) {
    %c1_i32 = arith.constant 1 : i32
    %0 = arith.muli %arg0, %c1_i32 : i32
    %1 = arith.addi %0, %arg1 : i32
    %c0_i32 = arith.constant 0 : i32
    %2 = arith.minsi %1, %c0_i32 : i32
    %c0_i32_0 = arith.constant 0 : i32
    %c0_i32_1 = arith.constant 0 : i32
    return %2, %c0_i32_0 : i32, i32
  }
  func.func @transform_1(%arg0: i32, %arg1: i32) -> (i32, i32) {
    %c1_i32 = arith.constant 1 : i32
    %0 = arith.muli %arg0, %c1_i32 : i32
    %1 = arith.addi %0, %arg1 : i32
    %c0_i32 = arith.constant 0 : i32
    %2 = arith.minsi %1, %c0_i32 : i32
    %c0_i32_0 = arith.constant 0 : i32
    %c0_i32_1 = arith.constant 0 : i32
    return %2, %c0_i32_0 : i32, i32
  }
  func.func @transform_2(%arg0: i32, %arg1: i32) -> (i32, i32, i32) {
    %c0_i32 = arith.constant 0 : i32
    %c0_i32_0 = arith.constant 0 : i32
    %c0_i32_1 = arith.constant 0 : i32
    return %arg0, %c0_i32, %c0_i32_0 : i32, i32, i32
  }
  func.func @transform_3(%arg0: i32, %arg1: i32) -> (i32, i32, i32) {
    %c0_i32 = arith.constant 0 : i32
    %c0_i32_0 = arith.constant 0 : i32
    %c0_i32_1 = arith.constant 0 : i32
    return %arg0, %c0_i32, %c0_i32_0 : i32, i32, i32
  }
}

</mosaic_0001>

<llo_original>
// kernel: tpu_custom_call.1
$region0: #{tpu_custom_call.1}
  #allocation0 [shape = 'u32[]', space=smem, size = 0x4, offset = 0x4, fixed_abs, tag = 'smem constant byte address 0x4 - core index']
  #allocation1 [shape = 'u32[144,128]{1,0:T(1,128)}', space=vmem, size = 0x12000, scoped, tag = 'internal scratch']
  %s0 = inlined_call_operand.hbm [shape: f32[16,128], index: 0, kind: input, shape index: {}]
  %s1 = inlined_call_operand.hbm [shape: f32[16,128], index: 1, kind: input, shape index: {}]
  %s2 = inlined_call_operand.hbm [shape: f32[1,8,128], index: 2, kind: output, shape index: {0}]
  %s3 = inlined_call_operand.hbm [shape: f32[1,8,128], index: 3, kind: output, shape index: {1}]
  %4 = xla_tuple %s2, %s3
  %s5 = sld [smem:[#allocation0]]
  $region38: #{tpu_custom_call.1} parent=0
    _
  %s7 = ssub.s32 1, %s5
  %s8 = scalar_select 0, %s7, %s5
  $region1: #{tpu_custom_call.1} parent=0
    #allocation2 [shape = 'u8[8192]{0}', space=vmem, size = 0x2000, scoped, tag = 'input window, operand 0, single buffered']
    #allocation3 [shape = 's32[1]{0}', space=sflag, size = 0x4, scoped, tag = 'scoped memory for tpu_custom_call.1']
    #allocation4 [shape = 's32[1]{0}', space=sflag, size = 0x4, scoped, tag = 'scoped memory for tpu_custom_call.1']
    #allocation5 [shape = 'u8[8192]{0}', space=vmem, size = 0x2000, scoped, tag = 'input window, operand 1, single buffered']
    #allocation6 [shape = 's32[1]{0}', space=sflag, size = 0x4, scoped, tag = 'scoped memory for tpu_custom_call.1']
    #allocation7 [shape = 'u8[4096]{0}', space=vmem, size = 0x1000, scoped, tag = 'output window, operand 0, single buffered']
    #allocation8 [shape = 'u8[4096]{0}', space=vmem, size = 0x1000, scoped, tag = 'output window, operand 1, single buffered']
    #allocation9 [shape = 's32[1]{0}', space=sflag, size = 0x4, scoped, tag = 'scoped memory for tpu_custom_call.1']
    %9 = vsyncpa [#allocation3], 0
    %10 = vsyncpa [#allocation6], 0
    %11 = vsyncpa [#allocation4], 0
    %12 = vsyncpa [#allocation9], 0
    // Predicated region
    $region2: #{tpu_custom_call.1} parent=1 // pred_check
      _
    $region3: #{tpu_custom_call.1} parent=1 // pred_check_branch
      %14 = sbr.rel (0) target = $region5
    $region4: #{tpu_custom_call.1} parent=1 // pred_region
      %s15 = sadd.s32 0, 0
      %p16 = scmp.lt.s32.totalorder %s15, 0
      %s17 = scalar_select %p16, %s15, 0
      %s18 = smul.u32 2, %s17
      %s20 = ssub.s32 256, 256
      %21 = vsyncadd [#allocation3], %s20
      %s22 = smul.addr %s18, 128
      %s23 = scalar_lea.hbm %s0, %s22
      %s24 = sshll.u32 [#allocation2], 4
      %s25 = int_to_ptr.vmem [resolvable:$true] %s24
      %30 = dma.hbm_to_vmem [thread:$0]  %s23, 256, %s25, [#allocation3], 128, 128, 8
    $region5: #{tpu_custom_call.1} parent=1 // pred_fallthru
      _
    // Predicated region
    $region6: #{tpu_custom_call.1} parent=1 // pred_check
      _
    $region7: #{tpu_custom_call.1} parent=1 // pred_check_branch
      %32 = sbr.rel (0) target = $region9
    $region8: #{tpu_custom_call.1} parent=1 // pred_region
      %s33 = sadd.s32 0, 0
      %p34 = scmp.lt.s32.totalorder %s33, 0
      %s35 = scalar_select %p34, %s33, 0
      %s36 = smul.u32 2, %s35
      %s38 = ssub.s32 256, 256
      %39 = vsyncadd [#allocation6], %s38
      %s40 = smul.addr %s36, 128
      %s41 = scalar_lea.hbm %s1, %s40
      %s42 = sshll.u32 [#allocation5], 4
      %s43 = int_to_ptr.vmem [resolvable:$true] %s42
      %48 = dma.hbm_to_vmem [thread:$0]  %s41, 256, %s43, [#allocation6], 128, 128, 8
    $region9: #{tpu_custom_call.1} parent=1 // pred_fallthru
      _
    // Predicated region
    $region10: #{tpu_custom_call.1} parent=1 // pred_check
      _
    $region11: #{tpu_custom_call.1} parent=1 // pred_check_branch
      %50 = sbr.rel (0) target = $region13
    $region12: #{tpu_custom_call.1} parent=1 // pred_region
      %51 = dma.done [#allocation3], 256
    $region13: #{tpu_custom_call.1} parent=1 // pred_fallthru
      _
    // Predicated region
    $region14: #{tpu_custom_call.1} parent=1 // pred_check
      _
    $region15: #{tpu_custom_call.1} parent=1 // pred_check_branch
      %53 = sbr.rel (0) target = $region17
    $region16: #{tpu_custom_call.1} parent=1 // pred_region
      %54 = dma.done [#allocation6], 256
    $region17: #{tpu_custom_call.1} parent=1 // pred_fallthru
      _
    %s55 = sadd.s32 0, 0
    %p56 = scmp.lt.s32.totalorder %s55, 0
    %s57 = scalar_select %p56, %s55, 0
    %s58 = smul.u32 2, %s57
    %s59 = sadd.s32 0, 0
    %p60 = scmp.lt.s32.totalorder %s59, 0
    %s61 = scalar_select %p60, %s59, 0
    %s62 = smul.u32 2, %s61
    %p63 = scmp.eq.s32.totalorder 0, 0
    // Predicated region
    $region18: #{tpu_custom_call.1} parent=1 // pred_check
      %p64 = pneg %p63
    $region19: #{tpu_custom_call.1} parent=1 // pred_check_branch
      %66 = sbr.rel (%p64) target = $region21
    $region20: #{tpu_custom_call.1} parent=1 // pred_region
      %67 = vst [vmem:[#allocation7] sm:$0xff] 0.0
      %68 = vst [vmem:[#allocation8] sm:$0xff] 0.0
    $region21: #{tpu_custom_call.1} parent=1 // pred_fallthru
      _
    %v69 = vld [vmem:[#allocation2] sm:$0xff]
    %v70 = vld [vmem:[#allocation2 + $0x8] sm:$0xff]
    %v71 = vld [vmem:[#allocation5] sm:$0xff]
    %v72 = vld [vmem:[#allocation5 + $0x8] sm:$0xff]
    %vm73 = vcmp.eq.f32.partialorder %v71, 1.0
    %vm74 = vcmp.eq.f32.partialorder %v72, 1.0
    %vm75 = vcmp.ge.f32.partialorder %v69, 0.5
    %vm76 = vcmp.ge.f32.partialorder %v70, 0.5
    %vm77 = vmand %vm73, %vm75
    %vm78 = vmand %vm74, %vm76
    %v79 = vld [vmem:[#allocation7] sm:$0xff]
    %v80 = vsel %vm77, 1, 0
    %v81 = vsel %vm78, 1, 0
    %v82 = vcvt.s32.f32 %v80
    %v83 = vcvt.s32.f32 %v81
    %v84 = vadd.f32 %v82, %v83
    %v85 = vadd.f32 %v79, %v84
    %86 = vst [vmem:[#allocation7] sm:$0xff] %v85
    %v87 = vld [vmem:[#allocation8] sm:$0xff]
    %v88 = vsel %vm73, 1, 0
    %v89 = vsel %vm74, 1, 0
    %v90 = vcvt.s32.f32 %v88
    %v91 = vcvt.s32.f32 %v89
    %v92 = vadd.f32 %v90, %v91
    %v93 = vadd.f32 %v87, %v92
    %94 = vst [vmem:[#allocation8] sm:$0xff] %v93
    // Predicated region
    $region22: #{tpu_custom_call.1} parent=1 // pred_check
      _
    $region23: #{tpu_custom_call.1} parent=1 // pred_check_branch
      %96 = sbr.rel (0) target = $region25
    $region24: #{tpu_custom_call.1} parent=1 // pred_region
      %s98 = ssub.s32 128, 128
      %99 = vsyncadd [#allocation4], %s98
      %s101 = sshll.u32 [#allocation7], 4
      %s102 = int_to_ptr.vmem [resolvable:$true] %s101
      %104 = dma.vmem_to_hbm [thread:$0]  %s102, 128, %s2, [#allocation4]
    $region25: #{tpu_custom_call.1} parent=1 // pred_fallthru
      _
    // Predicated region
    $region26: #{tpu_custom_call.1} parent=1 // pred_check
      _
    $region27: #{tpu_custom_call.1} parent=1 // pred_check_branch
      %106 = sbr.rel (0) target = $region29
    $region28: #{tpu_custom_call.1} parent=1 // pred_region
      %s108 = ssub.s32 128, 128
      %109 = vsyncadd [#allocation9], %s108
      %s111 = sshll.u32 [#allocation8], 4
      %s112 = int_to_ptr.vmem [resolvable:$true] %s111
      %114 = dma.vmem_to_hbm [thread:$0]  %s112, 128, %s3, [#allocation9]
    $region29: #{tpu_custom_call.1} parent=1 // pred_fallthru
      _
    // Predicated region
    $region30: #{tpu_custom_call.1} parent=1 // pred_check
      _
    $region31: #{tpu_custom_call.1} parent=1 // pred_check_branch
      %116 = sbr.rel (0) target = $region33
    $region32: #{tpu_custom_call.1} parent=1 // pred_region
      %117 = dma.done [#allocation4], 128
    $region33: #{tpu_custom_call.1} parent=1 // pred_fallthru
      _
    // Predicated region
    $region34: #{tpu_custom_call.1} parent=1 // pred_check
      _
    $region35: #{tpu_custom_call.1} parent=1 // pred_check_branch
      %119 = sbr.rel (0) target = $region37
    $region36: #{tpu_custom_call.1} parent=1 // pred_region
      %120 = dma.done [#allocation9], 128
    $region37: #{tpu_custom_call.1} parent=1 // pred_fallthru
      _
    %121 = vsyncpa [#allocation3], 1
    %122 = vsyncpa [#allocation6], 1
    %123 = vsyncpa [#allocation4], 1
    %124 = vsyncpa [#allocation9], 1

</llo_original>
